<compile_context>
chip_gen: v5e
topology: v5e:2x2
jax: 0.10.0
libtpu: 0.0.40
codegen_flags: <defaults>
</compile_context>

<pallas_src>
import jax
import jax.numpy as jnp
from jax.experimental import pallas as pl
from jax.experimental.pallas import tpu as pltpu


def _t_trans_kernel(x_ref, w1_ref, b1_ref, w2_ref, b2_ref, out_ref):
    # Linear1 + ReLU: MXU matmul with f32 accumulation, bias/ReLU on the
    # f32 accumulator (VPU).
    h = jnp.dot(x_ref[...], w1_ref[...], preferred_element_type=jnp.float32)
    h = jnp.maximum(h + b1_ref[...], 0.0)
    # Linear2 + ReLU.
    y = jnp.dot(h.astype(w2_ref.dtype), w2_ref[...],
                preferred_element_type=jnp.float32)
    y = jnp.maximum(y + b2_ref[...], 0.0)
    out_ref[...] = y.astype(out_ref.dtype)


def _round_up(x, m):
    return ((x + m - 1) // m) * m


def prepare_t_trans_params(w1, b1, w2, b2, dtype=None):
    """One-time parameter prep (hoisted out of the per-call path).

    Torch Linear stores W as (out, in); pre-transpose to (in, out) so the
    kernel computes plain x @ W on the MXU with no in-kernel transpose.
    Biases are reshaped to (1, out) rows for broadcast.
    """
    if dtype is None:
        dtype = w1.dtype
    w1_t = jnp.transpose(jnp.asarray(w1)).astype(dtype)          # (t_in, t1)
    w2_t = jnp.transpose(jnp.asarray(w2)).astype(dtype)          # (t1, t2)
    b1_r = jnp.asarray(b1).astype(jnp.float32).reshape(1, -1)    # (1, t1)
    b2_r = jnp.asarray(b2).astype(jnp.float32).reshape(1, -1)    # (1, t2)
    return w1_t, b1_r, w2_t, b2_r


def t_trans_forward(x, w1_t, b1_r, w2_t, b2_r, *, tm_cap=2048):
    """T_trans forward.

    x:    (..., T_in) input (any leading dims), any float dtype
    w1_t: (T_in, T1) pre-transposed Linear1 weight
    b1_r: (1, T1)    Linear1 bias row
    w2_t: (T1, T2)   pre-transposed Linear2 weight
    b2_r: (1, T2)    Linear2 bias row
    Returns (..., T2) in x.dtype.
    """
    t_in = x.shape[-1]
    t1 = w1_t.shape[1]
    t2 = w2_t.shape[1]
    assert w1_t.shape[0] == t_in and w2_t.shape[0] == t1

    lead = x.shape[:-1]
    m = 1
    for d in lead:
        m *= d
    x2 = x.reshape(m, t_in)

    # Row tile: as large as useful (per-step overhead amortization), capped so
    # the "parallel" row axis has >=2 grid steps (v7x megacore sharding).
    half = _round_up(max((m + 1) // 2, 1), 8)
    tm = max(8, min(tm_cap, half))
    m_p = _round_up(m, tm)

    # Pad rows only (zeros); padded rows are sliced off afterwards.  No
    # feature-dim padding: the last block dims use the full-array-dim
    # exception, keeping loads/stores at natural width.
    if m_p > m:
        x2 = jnp.pad(x2, ((0, m_p - m), (0, 0)))

    grid = (m_p // tm,)
    out = pl.pallas_call(
        _t_trans_kernel,
        out_shape=jax.ShapeDtypeStruct((m_p, t2), x.dtype),
        grid_spec=pltpu.PrefetchScalarGridSpec(
            num_scalar_prefetch=0,
            grid=grid,
            in_specs=[
                pl.BlockSpec((tm, t_in), lambda i: (i, 0)),   # x row block
                pl.BlockSpec((t_in, t1), lambda i: (0, 0)),   # W1 (full, resident)
                pl.BlockSpec((1, t1), lambda i: (0, 0)),      # b1
                pl.BlockSpec((t1, t2), lambda i: (0, 0)),     # W2 (full, resident)
                pl.BlockSpec((1, t2), lambda i: (0, 0)),      # b2
            ],
            out_specs=pl.BlockSpec((tm, t2), lambda i: (i, 0)),
        ),
        compiler_params=pltpu.CompilerParams(
            dimension_semantics=("parallel",),
        ),
    )(x2, w1_t, b1_r, w2_t, b2_r)

    if m_p > m:
        out = out[:m]
    return out.reshape(*lead, t2)


def _reference_forward(x, w1, b1, w2, b2):
    x = x.astype(jnp.float32)
    h = jnp.maximum(x @ jnp.transpose(w1) + b1, 0.0)
    y = jnp.maximum(h @ jnp.transpose(w2) + b2, 0.0)
    return y


if __name__ == "__main__":
    # Small shapes consistent with the module: x of shape
    # (batch, channels, nodes, T_) with T_ -> T1 -> T2 on the last axis.
    batch, channels, nodes = 2, 4, 16
    t_in, t1, t2 = 12, 32, 16

    key = jax.random.PRNGKey(0)
    k_x, k_w1, k_b1, k_w2, k_b2 = jax.random.split(key, 5)

    x = jax.random.normal(k_x, (batch, channels, nodes, t_in), jnp.float32)
    bound1 = 1.0 / (t_in ** 0.5)
    w1 = jax.random.uniform(k_w1, (t1, t_in), jnp.float32, -bound1, bound1)
    b1 = jax.random.uniform(k_b1, (t1,), jnp.float32, -bound1, bound1)
    bound2 = 1.0 / (t1 ** 0.5)
    w2 = jax.random.uniform(k_w2, (t2, t1), jnp.float32, -bound2, bound2)
    b2 = jax.random.uniform(k_b2, (t2,), jnp.float32, -bound2, bound2)

    # One-time parameter prep (hoisted out of the per-call path).
    w1_t, b1_r, w2_t, b2_r = prepare_t_trans_params(w1, b1, w2, b2)

    y = t_trans_forward(x, w1_t, b1_r, w2_t, b2_r)
    y = jax.block_until_ready(y)

    ref = _reference_forward(x, w1, b1, w2, b2)
    assert y.shape == (batch, channels, nodes, t2)
    assert jnp.allclose(y, ref, atol=1e-5, rtol=1e-5), "mismatch vs reference"

    print("KERNEL_OK")
</pallas_src>

<mosaic_0001>
module attributes {stable_mosaic.version = 11 : i64} {
  func.func @_t_trans_kernel(%arg0: i32, %arg1: memref<64x12xf32, #tpu.memory_space<vmem>>, %arg2: memref<12x32xf32, #tpu.memory_space<vmem>>, %arg3: memref<1x32xf32, #tpu.memory_space<vmem>>, %arg4: memref<32x16xf32, #tpu.memory_space<vmem>>, %arg5: memref<1x16xf32, #tpu.memory_space<vmem>>, %arg6: memref<64x16xf32, #tpu.memory_space<vmem>>) attributes {dimension_semantics = [#tpu.dimension_semantics<parallel>], iteration_bounds = array<i64: 2>, scalar_prefetch = 0 : i64, scratch_operands = 0 : i64, tpu.core_type = #tpu.core_type<tc>, window_params = [{transform_indices = @transform_0, window_bounds = array<i64: 64, 12>}, {pipeline_mode = #tpu.pipeline_mode<synchronous>, transform_indices = @transform_1, window_bounds = array<i64: 12, 32>}, {pipeline_mode = #tpu.pipeline_mode<synchronous>, transform_indices = @transform_2, window_bounds = array<i64: 1, 32>}, {pipeline_mode = #tpu.pipeline_mode<synchronous>, transform_indices = @transform_3, window_bounds = array<i64: 32, 16>}, {pipeline_mode = #tpu.pipeline_mode<synchronous>, transform_indices = @transform_4, window_bounds = array<i64: 1, 16>}, {transform_indices = @transform_5, window_bounds = array<i64: 64, 16>}]} {
    %c0 = arith.constant 0 : index
    %c0_0 = arith.constant 0 : index
    %0 = vector.load %arg1[%c0, %c0_0] : memref<64x12xf32, #tpu.memory_space<vmem>>, vector<64x12xf32>
    %c0_1 = arith.constant 0 : index
    %c0_2 = arith.constant 0 : index
    %1 = vector.load %arg2[%c0_1, %c0_2] : memref<12x32xf32, #tpu.memory_space<vmem>>, vector<12x32xf32>
    %cst = arith.constant dense<0.000000e+00> : vector<64x32xf32>
    %2 = tpu.matmul %0, %1, %cst {dimension_numbers = #tpu.dot_dimension_numbers<[1], [0], [0], [1], [0, 0, 1, 1], [], []>} : vector<64x12xf32>, vector<12x32xf32>, vector<64x32xf32> -> vector<64x32xf32>
    %c0_3 = arith.constant 0 : index
    %c0_4 = arith.constant 0 : index
    %3 = vector.load %arg3[%c0_3, %c0_4] : memref<1x32xf32, #tpu.memory_space<vmem>>, vector<1x32xf32>
    %4 = vector.broadcast %3 : vector<1x32xf32> to vector<64x32xf32>
    %5 = arith.addf %2, %4 : vector<64x32xf32>
    %cst_5 = arith.constant 0.000000e+00 : f32
    %6 = vector.broadcast %cst_5 : f32 to vector<64x32xf32>
    %7 = arith.maximumf %5, %6 : vector<64x32xf32>
    %c0_6 = arith.constant 0 : index
    %c0_7 = arith.constant 0 : index
    %8 = vector.load %arg4[%c0_6, %c0_7] : memref<32x16xf32, #tpu.memory_space<vmem>>, vector<32x16xf32>
    %cst_8 = arith.constant dense<0.000000e+00> : vector<64x16xf32>
    %9 = tpu.matmul %7, %8, %cst_8 {dimension_numbers = #tpu.dot_dimension_numbers<[1], [0], [0], [1], [0, 0, 1, 1], [], []>} : vector<64x32xf32>, vector<32x16xf32>, vector<64x16xf32> -> vector<64x16xf32>
    %c0_9 = arith.constant 0 : index
    %c0_10 = arith.constant 0 : index
    %10 = vector.load %arg5[%c0_9, %c0_10] : memref<1x16xf32, #tpu.memory_space<vmem>>, vector<1x16xf32>
    %11 = vector.broadcast %10 : vector<1x16xf32> to vector<64x16xf32>
    %12 = arith.addf %9, %11 : vector<64x16xf32>
    %cst_11 = arith.constant 0.000000e+00 : f32
    %13 = vector.broadcast %cst_11 : f32 to vector<64x16xf32>
    %14 = arith.maximumf %12, %13 : vector<64x16xf32>
    %c0_12 = arith.constant 0 : index
    %c0_13 = arith.constant 0 : index
    %15 = vector.load %arg6[%c0_12, %c0_13] : memref<64x16xf32, #tpu.memory_space<vmem>>, vector<64x16xf32>
    tpu.vector_store %arg6[%c0_12, %c0_13], %14 {strides = array<i32>} : memref<64x16xf32, #tpu.memory_space<vmem>>, vector<64x16xf32>,
    return
  }
  func.func @transform_0(%arg0: i32) -> (i32, i32) {
    %c0_i32 = arith.constant 0 : i32
    %c0_i32_0 = arith.constant 0 : i32
    return %arg0, %c0_i32 : i32, i32
  }
  func.func @transform_1(%arg0: i32) -> (i32, i32) {
    %c0_i32 = arith.constant 0 : i32
    %c0_i32_0 = arith.constant 0 : i32
    %c0_i32_1 = arith.constant 0 : i32
    return %c0_i32, %c0_i32_0 : i32, i32
  }
  func.func @transform_2(%arg0: i32) -> (i32, i32) {
    %c0_i32 = arith.constant 0 : i32
    %c0_i32_0 = arith.constant 0 : i32
    %c0_i32_1 = arith.constant 0 : i32
    return %c0_i32, %c0_i32_0 : i32, i32
  }
  func.func @transform_3(%arg0: i32) -> (i32, i32) {
    %c0_i32 = arith.constant 0 : i32
    %c0_i32_0 = arith.constant 0 : i32
    %c0_i32_1 = arith.constant 0 : i32
    return %c0_i32, %c0_i32_0 : i32, i32
  }
  func.func @transform_4(%arg0: i32) -> (i32, i32) {
    %c0_i32 = arith.constant 0 : i32
    %c0_i32_0 = arith.constant 0 : i32
    %c0_i32_1 = arith.constant 0 : i32
    return %c0_i32, %c0_i32_0 : i32, i32
  }
  func.func @transform_5(%arg0: i32) -> (i32, i32) {
    %c0_i32 = arith.constant 0 : i32
    %c0_i32_0 = arith.constant 0 : i32
    return %arg0, %c0_i32 : i32, i32
  }
}

</mosaic_0001>

<llo_original>
// kernel: tpu_custom_call.1
$region0: #{tpu_custom_call.1}
  #allocation0 [shape = 'u32[]', space=smem, size = 0x4, offset = 0x4, fixed_abs, tag = 'smem constant byte address 0x4 - core index']
  #allocation1 [shape = 'u32[72,128]{1,0:T(1,128)}', space=vmem, size = 0x9000, scoped, tag = 'internal scratch']
  %s0 = inlined_call_operand.vmem [shape: f32[128,12], index: 0, kind: input, shape index: {}]
  %s1 = inlined_call_operand.vmem [shape: f32[12,32], index: 1, kind: input, shape index: {}]
  %s2 = inlined_call_operand.vmem [shape: f32[1,32], index: 2, kind: input, shape index: {}]
  %s3 = inlined_call_operand.vmem [shape: f32[32,16], index: 3, kind: input, shape index: {}]
  %s4 = inlined_call_operand.vmem [shape: f32[1,16], index: 4, kind: input, shape index: {}]
  %s5 = inlined_call_operand.vmem [shape: f32[128,16], index: 5, kind: output, shape index: {}]
  %s6 = sld [smem:[#allocation0]]
  $region53: #{tpu_custom_call.1} parent=0
    _
  %s8 = ssub.s32 1, %s6
  %s9 = scalar_select 0, %s8, %s6
  loop: start=0, step=1, limit=4
  $region2: #{tpu_custom_call.1} parent=0 // loop_pre_header
    _
  $region3: #{tpu_custom_call.1} parent=0 // loop_header
    %s11 = sphi 0, %s15
    %p12 = scmp.ge.s32.totalorder %s11, 4
    %s21 = sphi 0, %s23
    %s24 = sphi 0, %s21
    %s25 = sphi 0, %s24
    %s41 = sphi 0, %s25
    %s45 = sphi 0, %s45
    %s47 = sphi 0, %s45
    %s48 = sphi 0, %s47
    %s62 = sphi 0, %s48
    %s66 = sphi 0, %s66
    %s68 = sphi 0, %s66
    %s69 = sphi 0, %s68
    %s83 = sphi 0, %s69
    %s87 = sphi 0, %s87
    %s89 = sphi 0, %s87
    %s90 = sphi 0, %s89
    %s104 = sphi 0, %s90
    %s108 = sphi 0, %s108
    %s110 = sphi 0, %s108
    %s111 = sphi 0, %s110
    %s125 = sphi 0, %s111
    %s131 = sphi 0, %s133
    %s134 = sphi 0, %s131
    %s135 = sphi 0, %s134
    %s151 = sphi 0, %s135
  $region4: #{tpu_custom_call.1} parent=0 // loop_header_branch
    %14 = sbr.rel (%p12) target = $region8
  $region5: #{tpu_custom_call.1} parent=0 // loop_body
    %s16 = ssub.s32 %s11, 1
    %s17 = ssub.s32 %s11, 2
    %s18 = sadd.s32 %s11, 1
    %s19 = ssub.s32 %s11, %s18
    %p20 = scmp.eq.s32.totalorder %s19, 0
    %s22 = sadd.s32 %s21, 1
    %s23 = scalar_select %p20, %s21, %s22
    %p26 = pneg %p20
    %p27 = scmp.eq.s32.totalorder %s11, 1
    %p28 = por %p26, %p27
    %p29 = scmp.ne.s32.totalorder %s21, %s24
    %p30 = scmp.eq.s32.totalorder %s11, 0
    %p31 = por %p29, %p30
    %p32 = scmp.ne.s32.totalorder %s21, %s24
    %p33 = scmp.eq.s32.totalorder %s16, 1
    %p34 = por %p32, %p33
    %p35 = scmp.ne.s32.totalorder %s24, %s25
    %p36 = scmp.eq.s32.totalorder %s16, 0
    %p37 = por %p35, %p36
    %p38 = scmp.ne.s32.totalorder %s24, %s25
    %p39 = scmp.eq.s32.totalorder %s17, 1
    %p40 = por %p38, %p39
    %p42 = scmp.ne.s32.totalorder %s25, %s41
    %p43 = scmp.eq.s32.totalorder %s17, 0
    %p44 = por %p42, %p43
    %s46 = sadd.s32 %s45, 1
    %p49 = scmp.eq.s32.totalorder %s11, 1
    %p50 = scmp.ne.s32.totalorder %s45, %s47
    %p51 = scmp.eq.s32.totalorder %s11, 0
    %p52 = por %p50, %p51
    %p53 = scmp.ne.s32.totalorder %s45, %s47
    %p54 = scmp.eq.s32.totalorder %s16, 1
    %p55 = por %p53, %p54
    %p56 = scmp.ne.s32.totalorder %s47, %s48
    %p57 = scmp.eq.s32.totalorder %s16, 0
    %p58 = por %p56, %p57
    %p59 = scmp.ne.s32.totalorder %s47, %s48
    %p60 = scmp.eq.s32.totalorder %s17, 1
    %p61 = por %p59, %p60
    %p63 = scmp.ne.s32.totalorder %s48, %s62
    %p64 = scmp.eq.s32.totalorder %s17, 0
    %p65 = por %p63, %p64
    %s67 = sadd.s32 %s66, 1
    %p70 = scmp.eq.s32.totalorder %s11, 1
    %p71 = scmp.ne.s32.totalorder %s66, %s68
    %p72 = scmp.eq.s32.totalorder %s11, 0
    %p73 = por %p71, %p72
    %p74 = scmp.ne.s32.totalorder %s66, %s68
    %p75 = scmp.eq.s32.totalorder %s16, 1
    %p76 = por %p74, %p75
    %p77 = scmp.ne.s32.totalorder %s68, %s69
    %p78 = scmp.eq.s32.totalorder %s16, 0
    %p79 = por %p77, %p78
    %p80 = scmp.ne.s32.totalorder %s68, %s69
    %p81 = scmp.eq.s32.totalorder %s17, 1
    %p82 = por %p80, %p81
    %p84 = scmp.ne.s32.totalorder %s69, %s83
    %p85 = scmp.eq.s32.totalorder %s17, 0
    %p86 = por %p84, %p85
    %s88 = sadd.s32 %s87, 1
    %p91 = scmp.eq.s32.totalorder %s11, 1
    %p92 = scmp.ne.s32.totalorder %s87, %s89
    %p93 = scmp.eq.s32.totalorder %s11, 0
    %p94 = por %p92, %p93
    %p95 = scmp.ne.s32.totalorder %s87, %s89
    %p96 = scmp.eq.s32.totalorder %s16, 1
    %p97 = por %p95, %p96
    %p98 = scmp.ne.s32.totalorder %s89, %s90
    %p99 = scmp.eq.s32.totalorder %s16, 0
    %p100 = por %p98, %p99
    %p101 = scmp.ne.s32.totalorder %s89, %s90
    %p102 = scmp.eq.s32.totalorder %s17, 1
    %p103 = por %p101, %p102
    %p105 = scmp.ne.s32.totalorder %s90, %s104
    %p106 = scmp.eq.s32.totalorder %s17, 0
    %p107 = por %p105, %p106
    %s109 = sadd.s32 %s108, 1
    %p112 = scmp.eq.s32.totalorder %s11, 1
    %p113 = scmp.ne.s32.totalorder %s108, %s110
    %p114 = scmp.eq.s32.totalorder %s11, 0
    %p115 = por %p113, %p114
    %p116 = scmp.ne.s32.totalorder %s108, %s110
    %p117 = scmp.eq.s32.totalorder %s16, 1
    %p118 = por %p116, %p117
    %p119 = scmp.ne.s32.totalorder %s110, %s111
    %p120 = scmp.eq.s32.totalorder %s16, 0
    %p121 = por %p119, %p120
    %p122 = scmp.ne.s32.totalorder %s110, %s111
    %p123 = scmp.eq.s32.totalorder %s17, 1
    %p124 = por %p122, %p123
    %p126 = scmp.ne.s32.totalorder %s111, %s125
    %p127 = scmp.eq.s32.totalorder %s17, 0
    %p128 = por %p126, %p127
    %s129 = ssub.s32 %s11, %s18
    %p130 = scmp.eq.s32.totalorder %s129, 0
    %s132 = sadd.s32 %s131, 1
    %s133 = scalar_select %p130, %s131, %s132
    %p136 = pneg %p130
    %p137 = scmp.eq.s32.totalorder %s11, 1
    %p138 = por %p136, %p137
    %p139 = scmp.ne.s32.totalorder %s131, %s134
    %p140 = scmp.eq.s32.totalorder %s11, 0
    %p141 = por %p139, %p140
    %p142 = scmp.ne.s32.totalorder %s131, %s134
    %p143 = scmp.eq.s32.totalorder %s16, 1
    %p144 = por %p142, %p143
    %p145 = scmp.ne.s32.totalorder %s134, %s135
    %p146 = scmp.eq.s32.totalorder %s16, 0
    %p147 = por %p145, %p146
    %p148 = scmp.ne.s32.totalorder %s134, %s135
    %p149 = scmp.eq.s32.totalorder %s17, 1
    %p150 = por %p148, %p149
    %p152 = scmp.ne.s32.totalorder %s135, %s151
    %p153 = scmp.eq.s32.totalorder %s17, 0
    %p154 = por %p152, %p153
    %p155 = scmp.le.s32.totalorder 1, %s11
    %p156 = scmp.lt.s32.totalorder %s11, 3
    %p157 = pnand %p155, %p156
    %p158 = pneg %p157
    // Predicated region
    $region9: #{tpu_custom_call.1} parent=5 // pred_check
      _
    $region10: #{tpu_custom_call.1} parent=5 // pred_check_branch
      %160 = sbr.rel (%p157) target = $region12
    $region11: #{tpu_custom_call.1} parent=5 // pred_region
      %s161 = ssub.s32 %s11, 1
      // Predicated region
      $region13: #{tpu_custom_call.1} parent=11 // pred_check
        %p162 = pneg %p58
      $region14: #{tpu_custom_call.1} parent=11 // pred_check_branch
        %164 = sbr.rel (%p162) target = $region16
      $region15: #{tpu_custom_call.1} parent=11 // pred_region
        _
      $region16: #{tpu_custom_call.1} parent=11 // pred_fallthru
        _
      // Predicated region
      $region17: #{tpu_custom_call.1} parent=11 // pred_check
        %p165 = pneg %p79
      $region18: #{tpu_custom_call.1} parent=11 // pred_check_branch
        %167 = sbr.rel (%p165) target = $region20
      $region19: #{tpu_custom_call.1} parent=11 // pred_region
        _
      $region20: #{tpu_custom_call.1} parent=11 // pred_fallthru
        _
      // Predicated region
      $region21: #{tpu_custom_call.1} parent=11 // pred_check
        %p168 = pneg %p100
      $region22: #{tpu_custom_call.1} parent=11 // pred_check_branch
        %170 = sbr.rel (%p168) target = $region24
      $region23: #{tpu_custom_call.1} parent=11 // pred_region
        _
      $region24: #{tpu_custom_call.1} parent=11 // pred_fallthru
        _
      // Predicated region
      $region25: #{tpu_custom_call.1} parent=11 // pred_check
        %p171 = pneg %p121
      $region26: #{tpu_custom_call.1} parent=11 // pred_check_branch
        %173 = sbr.rel (%p171) target = $region28
      $region27: #{tpu_custom_call.1} parent=11 // pred_region
        _
      $region28: #{tpu_custom_call.1} parent=11 // pred_fallthru
        _
    $region12: #{tpu_custom_call.1} parent=5 // pred_fallthru
      _
    %p174 = scmp.lt.s32.totalorder %s11, 2
    // Predicated region
    $region29: #{tpu_custom_call.1} parent=5 // pred_check
      %p175 = pneg %p174
    $region30: #{tpu_custom_call.1} parent=5 // pred_check_branch
      %177 = sbr.rel (%p175) target = $region32
    $region31: #{tpu_custom_call.1} parent=5 // pred_region
      // Predicated region
      $region33: #{tpu_custom_call.1} parent=31 // pred_check
        %p178 = pneg %p31
      $region34: #{tpu_custom_call.1} parent=31 // pred_check_branch
        %180 = sbr.rel (%p178) target = $region36
      $region35: #{tpu_custom_call.1} parent=31 // pred_region
        %s181 = smul.u32 8, %s11
        %p182 = scmp.lt.s32.totalorder %s181, 15
        %s183 = scalar_select %p182, %s181, 15
        %s184 = smul.addr %s183, 8
        %s185 = scalar_lea.vmem %s0, %s184
        %s186 = smul.u32 8, %s11
      $region36: #{tpu_custom_call.1} parent=31 // pred_fallthru
        _
    $region32: #{tpu_custom_call.1} parent=5 // pred_fallthru
      _
    %p187 = scmp.le.s32.totalorder 1, %s11
    %p188 = scmp.lt.s32.totalorder %s11, 3
    %p189 = pnand %p187, %p188
    %p190 = pneg %p189
    // Predicated region
    $region37: #{tpu_custom_call.1} parent=5 // pred_check
      _
    $region38: #{tpu_custom_call.1} parent=5 // pred_check_branch
      %192 = sbr.rel (%p189) target = $region40
    $region39: #{tpu_custom_call.1} parent=5 // pred_region
      %s193 = ssub.s32 %s11, 1
      %s194 = smul.u32 8, %s16
      %p195 = scmp.lt.s32.totalorder %s194, 15
      %s196 = scalar_select %p195, %s194, 15
      %s197 = smul.addr %s196, 8
      %s198 = scalar_lea.vmem %s0, %s197
      %p199 = pneg %p37
      %p200 = pneg %p34
      %p201 = pneg %p58
      %p202 = pneg %p55
      %p203 = pneg %p79
      %p204 = pneg %p76
      %p205 = pneg %p100
      %p206 = pneg %p97
      %p207 = pneg %p121
      %p208 = pneg %p118
      %p209 = pneg %p147
      %p210 = pneg %p144
      %s211 = smul.u32 8, %s16
      %p212 = scmp.lt.s32.totalorder %s211, 15
      %s213 = scalar_select %p212, %s211, 15
      %s214 = smul.addr %s213, 8
      %s215 = scalar_lea.vmem %s5, %s214
      %s216 = smul.u32 8, %s16
      %p217 = scmp.lt.s32.totalorder %s216, 15
      %s218 = scalar_select %p217, %s216, 15
      %s219 = smul.addr %s218, 8
      %s220 = scalar_lea.vmem %s0, %s219
      %s221 = smul.u32 8, %s16
      %s222 = smul.u32 8, %s16
      %p223 = scmp.lt.s32.totalorder %s222, 15
      %s224 = scalar_select %p223, %s222, 15
      %s225 = smul.addr %s224, 8
      %s226 = scalar_lea.vmem %s5, %s225
      %s227 = smul.u32 8, %s16
      %v228 = vld [vmem:[%s220] sm:$0xff]
      %v229 = vld [vmem:[%s220 + $0x8] sm:$0xff]
      %v230 = vld [vmem:[%s220 + $0x10] sm:$0xff]
      %v231 = vld [vmem:[%s220 + $0x18] sm:$0xff]
      %v232 = vld [vmem:[%s220 + $0x20] sm:$0xff]
      %v233 = vld [vmem:[%s220 + $0x28] sm:$0xff]
      %v234 = vld [vmem:[%s220 + $0x30] sm:$0xff]
      %v235 = vld [vmem:[%s220 + $0x38] sm:$0xff]
      %v236 = vld [vmem:[%s1] sm:$0xff]
      %v237 = vld [vmem:[%s1 + $0x8] sm:$0xf]
      %v238 = vld [vmem:[%s2] sm:$0x1]
      %v240 = vperm.slane %v238, 0
      %vm242 = vcmask 97280
      %v244 = vsel %vm242, %v228, 0
      %v247 = vsel %vm242, %v229, 0
      %v250 = vsel %vm242, %v230, 0
      %v253 = vsel %vm242, %v231, 0
      %v256 = vsel %vm242, %v232, 0
      %v259 = vsel %vm242, %v233, 0
      %v262 = vsel %vm242, %v234, 0
      %v265 = vsel %vm242, %v235, 0
      %vm267 = vcmask 1043456
      %v269 = vsel %vm267, %v237, 0
      %271 = vmatpush.msra.mxu0 0.0
      %272 = vmatpush.msra.mxu0 0.0
      %273 = vmatpush.msra.mxu0 0.0
      %274 = vmatpush.msra.mxu0 0.0
      %275 = vmatpush.msra.mxu0 0.0
      %276 = vmatpush.msra.mxu0 0.0
      %277 = vmatpush.msra.mxu0 0.0
      %278 = vmatpush.msra.mxu0 0.0
      %279 = vmatpush.msra.mxu0 0.0
      %280 = vmatpush.msra.mxu0 0.0
      %281 = vmatpush.msra.mxu0 0.0
      %282 = vmatpush.msra.mxu0 0.0
      %283 = vmatpush.msra.mxu0 0.0
      %284 = vmatpush.msra.mxu0 0.0
      %285 = vmatpush.msra.mxu0 %v269
      %286 = vmatpush.msra.mxu0 %v236
      %287 = vmatmul.f32.gmra.mxu0 %v244
      %v288 = vpop.f32.mrf.mxu0
      %v289 = vadd.f32 %v240, %v288
      %290 = vmatmul.f32.gmra.mxu0 %v247
      %v291 = vpop.f32.mrf.mxu0
      %v292 = vadd.f32 %v240, %v291
      %293 = vmatmul.f32.gmra.mxu0 %v250
      %v294 = vpop.f32.mrf.mxu0
      %v295 = vadd.f32 %v240, %v294
      %296 = vmatmul.f32.gmra.mxu0 %v253
      %v297 = vpop.f32.mrf.mxu0
      %v298 = vadd.f32 %v240, %v297
      %299 = vmatmul.f32.gmra.mxu0 %v256
      %v300 = vpop.f32.mrf.mxu0
      %v301 = vadd.f32 %v240, %v300
      %302 = vmatmul.f32.gmra.mxu0 %v259
      %v303 = vpop.f32.mrf.mxu0
      %v304 = vadd.f32 %v240, %v303
      %305 = vmatmul.f32.gmra.mxu0 %v262
      %v306 = vpop.f32.mrf.mxu0
      %v307 = vadd.f32 %v240, %v306
      %308 = vmatmul.f32.gmra.mxu0 %v265
      %v309 = vpop.f32.mrf.mxu0
      %v310 = vadd.f32 %v240, %v309
      %311 = vdwg.mxu0
      %v312 = vmax.f32 %v289, 0.0
      %v313 = vmax.f32 %v292, 0.0
      %v314 = vmax.f32 %v295, 0.0
      %v315 = vmax.f32 %v298, 0.0
      %v316 = vmax.f32 %v301, 0.0
      %v317 = vmax.f32 %v304, 0.0
      %v318 = vmax.f32 %v307, 0.0
      %v319 = vmax.f32 %v310, 0.0
      %v320 = vld [vmem:[%s3] sm:$0xff]
      %v321 = vld [vmem:[%s3 + $0x8] sm:$0xff]
      %v322 = vld [vmem:[%s3 + $0x10] sm:$0xff]
      %v323 = vld [vmem:[%s3 + $0x18] sm:$0xff]
      %v324 = vld [vmem:[%s4] sm:$0x1]
      %v326 = vperm.slane %v324, 0
      %vm328 = vcmask 261120
      %v330 = vsel %vm328, %v312, 0
      %v333 = vsel %vm328, %v313, 0
      %v336 = vsel %vm328, %v314, 0
      %v339 = vsel %vm328, %v315, 0
      %v342 = vsel %vm328, %v316, 0
      %v345 = vsel %vm328, %v317, 0
      %v348 = vsel %vm328, %v318, 0
      %v351 = vsel %vm328, %v319, 0
      %353 = vmatpush.msra.mxu0 0.0
      %354 = vmatpush.msra.mxu0 0.0
      %355 = vmatpush.msra.mxu0 0.0
      %356 = vmatpush.msra.mxu0 0.0
      %357 = vmatpush.msra.mxu0 0.0
      %358 = vmatpush.msra.mxu0 0.0
      %359 = vmatpush.msra.mxu0 0.0
      %360 = vmatpush.msra.mxu0 0.0
      %361 = vmatpush.msra.mxu0 0.0
      %362 = vmatpush.msra.mxu0 0.0
      %363 = vmatpush.msra.mxu0 0.0
      %364 = vmatpush.msra.mxu0 0.0
      %365 = vmatpush.msra.mxu0 %v323
      %366 = vmatpush.msra.mxu0 %v322
      %367 = vmatpush.msra.mxu0 %v321
      %368 = vmatpush.msra.mxu0 %v320
      %369 = vmatmul.f32.gmra.mxu0 %v330
      %v370 = vpop.f32.mrf.mxu0
      %v371 = vadd.f32 %v326, %v370
      %372 = vmatmul.f32.gmra.mxu0 %v333
      %v373 = vpop.f32.mrf.mxu0
      %v374 = vadd.f32 %v326, %v373
      %375 = vmatmul.f32.gmra.mxu0 %v336
      %v376 = vpop.f32.mrf.mxu0
      %v377 = vadd.f32 %v326, %v376
      %378 = vmatmul.f32.gmra.mxu0 %v339
      %v379 = vpop.f32.mrf.mxu0
      %v380 = vadd.f32 %v326, %v379
      %381 = vmatmul.f32.gmra.mxu0 %v342
      %v382 = vpop.f32.mrf.mxu0
      %v383 = vadd.f32 %v326, %v382
      %384 = vmatmul.f32.gmra.mxu0 %v345
      %v385 = vpop.f32.mrf.mxu0
      %v386 = vadd.f32 %v326, %v385
      %387 = vmatmul.f32.gmra.mxu0 %v348
      %v388 = vpop.f32.mrf.mxu0
      %v389 = vadd.f32 %v326, %v388
      %390 = vmatmul.f32.gmra.mxu0 %v351
      %v391 = vpop.f32.mrf.mxu0
      %v392 = vadd.f32 %v326, %v391
      %393 = vdwg.mxu0
      %v394 = vmax.f32 %v371, 0.0
      %v395 = vmax.f32 %v374, 0.0
      %v396 = vmax.f32 %v377, 0.0
      %v397 = vmax.f32 %v380, 0.0
      %v398 = vmax.f32 %v383, 0.0
      %v399 = vmax.f32 %v386, 0.0
      %v400 = vmax.f32 %v389, 0.0
      %v401 = vmax.f32 %v392, 0.0
      %vm402 = vcmask 130048
      %403 = vst.msk [vmem:[%s226] sm:$0xff] %vm402, %v394
      %404 = vst.msk [vmem:[%s226 + $0x8] sm:$0xff] %vm402, %v395
      %405 = vst.msk [vmem:[%s226 + $0x10] sm:$0xff] %vm402, %v396
      %406 = vst.msk [vmem:[%s226 + $0x18] sm:$0xff] %vm402, %v397
      %407 = vst.msk [vmem:[%s226 + $0x20] sm:$0xff] %vm402, %v398
      %408 = vst.msk [vmem:[%s226 + $0x28] sm:$0xff] %vm402, %v399
      %409 = vst.msk [vmem:[%s226 + $0x30] sm:$0xff] %vm402, %v400
      %410 = vst.msk [vmem:[%s226 + $0x38] sm:$0xff] %vm402, %v401
      %s411 = smul.u32 8, %s16
      %p412 = scmp.lt.s32.totalorder %s411, 15
      %s413 = scalar_select %p412, %s411, 15
      %s414 = smul.addr %s413, 8
      %s415 = scalar_lea.vmem %s5, %s414
      // Predicated region
      $region41: #{tpu_custom_call.1} parent=39 // pred_check
        %p416 = pneg %p144
      $region42: #{tpu_custom_call.1} parent=39 // pred_check_branch
        %418 = sbr.rel (%p416) target = $region44
      $region43: #{tpu_custom_call.1} parent=39 // pred_region
        %s419 = smul.u32 8, %s16
      $region44: #{tpu_custom_call.1} parent=39 // pred_fallthru
        _
    $region40: #{tpu_custom_call.1} parent=5 // pred_fallthru
      _
    %p420 = scmp.le.s32.totalorder 2, %s11
    // Predicated region
    $region45: #{tpu_custom_call.1} parent=5 // pred_check
      %p421 = pneg %p420
    $region46: #{tpu_custom_call.1} parent=5 // pred_check_branch
      %423 = sbr.rel (%p421) target = $region48
    $region47: #{tpu_custom_call.1} parent=5 // pred_region
      %s424 = ssub.s32 %s11, 2
      // Predicated region
      $region49: #{tpu_custom_call.1} parent=47 // pred_check
        %p425 = pneg %p150
      $region50: #{tpu_custom_call.1} parent=47 // pred_check_branch
        %427 = sbr.rel (%p425) target = $region52
      $region51: #{tpu_custom_call.1} parent=47 // pred_region
        %s428 = smul.u32 8, %s17
        %p429 = scmp.lt.s32.totalorder %s428, 15
        %s430 = scalar_select %p429, %s428, 15
        %s431 = smul.addr %s430, 8
        %s432 = scalar_lea.vmem %s5, %s431
      $region52: #{tpu_custom_call.1} parent=47 // pred_fallthru
        _
    $region48: #{tpu_custom_call.1} parent=5 // pred_fallthru
      _
  $region6: #{tpu_custom_call.1} parent=0 // loop_footer
    %s15 = sadd.s32 1, %s11
  $region7: #{tpu_custom_call.1} parent=0 // loop_footer_branch
    %10 = sbr.rel target = $region3
  $region8: #{tpu_custom_call.1} parent=0 // loop_exit
    _

</llo_original>
